<compile_context>
chip_gen: v5e
topology: v5e:2x2
jax: 0.10.0
libtpu: 0.0.40
codegen_flags: <defaults>
</compile_context>

<pallas_src>
import jax
import jax.numpy as jnp
from jax import lax
from jax.experimental import pallas as pl
from jax.experimental.pallas import tpu as pltpu

BN_EPS = 1e-5
LEAKY_SLOPE = 0.01


def _round_up(x, m):
    return (x + m - 1) // m * m


def _make_conv_stats_kernel(C, Ho, Wo, Lw_pad):
    """3x3/stride-2 conv of one image (from its 4 stride-2 phases) + per-image
    BN partial statistics, in a single pass."""
    Wo1 = Wo + 1

    def kernel(w_ref, mask_ref, p00_ref, p01_ref, p10_ref, p11_ref,
               y_ref, stats_ref):
        # w_ref:     (9, C, C)        bf16  tap-major conv weights (t = kh*3+kw)
        # mask_ref:  (1, Lw_pad)      f32   1.0 on valid output pixels, else 0.0
        # pXY_ref:   (1, C, Lph_pad)  bf16  flattened stride-2 phase (X, Y) of xp
        # y_ref:     (1, C, Lw_pad)   bf16  conv output, over-wide (Ho x (Wo+1)) flat
        # stats_ref: (1, C, 2)        f32   per-image per-channel (sum, sumsq)
        phases = ((p00_ref, p01_ref), (p10_ref, p11_ref))
        acc = jnp.zeros((C, Lw_pad), jnp.float32)
        for kh in range(3):
            for kw in range(3):
                t = kh * 3 + kw
                ph_ref = phases[kh % 2][kw % 2]
                off = (kh // 2) * Wo1 + (kw // 2)        # static flat offset
                rhs = ph_ref[0, :, pl.ds(off, Lw_pad)]   # (C, Lw_pad) bf16
                acc = acc + jnp.dot(w_ref[t], rhs,
                                    preferred_element_type=jnp.float32)
        # BN partial stats from the f32 accumulator, masked to the true Ho*Wo
        # pixels (the Wo-th "wrap" column of each row + lane-pad tail are junk).
        yv = acc * mask_ref[...]
        stats_ref[0, :, 0:1] = jnp.sum(yv, axis=1, keepdims=True)
        stats_ref[0, :, 1:2] = jnp.sum(yv * acc, axis=1, keepdims=True)
        # bf16 intermediate halves the HBM write and the epilogue's read.
        y_ref[0] = acc.astype(y_ref.dtype)

    return kernel


def downsample_forward(x, conv_weight, gamma, beta, *, compute_dtype=jnp.bfloat16):
    """x: (N, C, H, W) f32; conv_weight: (C, C, 3, 3); gamma, beta: (C,).

    Returns LeakyReLU(BatchNorm(Conv3x3_s2_reflect(x))) in NCHW f32, with
    BatchNorm using train-mode (biased) batch statistics like a freshly
    constructed nn.BatchNorm2d in training mode.
    """
    N, C, H, W = x.shape
    Ho = (H + 2 - 3) // 2 + 1
    Wo = (W + 2 - 3) // 2 + 1
    Wo1 = Wo + 1
    Lw = Ho * Wo1                         # over-wide flat output length / image
    Lw_pad = _round_up(Lw, 128)           # lane-dense compute / store width
    Lph = (Ho + 1) * Wo1                  # flattened phase length / image
    # Deepest tap window starts at flat offset Wo1+1 and spans Lw_pad elements.
    Lph_pad = _round_up(max(Lph, Wo1 + 1 + Lw_pad), 128)

    # Reflect-pad once, cast to bf16 (intentional numerics choice).
    xb = jnp.pad(x.astype(compute_dtype), ((0, 0), (0, 0), (1, 1), (1, 1)),
                 mode="reflect")

    # Stride-2 phase decimation (space-to-depth): phase(a,b)[r, s] = xp[2r+a, 2s+b].
    # Conv tap (kh, kw) for output pixel flat-index k is then phase(kh%2, kw%2)
    # at flat index k + (kh//2)*(Wo+1) + kw//2  -> contiguous, statically-offset
    # windows; no im2col needed.
    def _phase(a, b):
        ph = xb[:, :, a::2, b::2]
        ph = jnp.pad(ph, ((0, 0), (0, 0),
                          (0, Ho + 1 - ph.shape[2]),
                          (0, Wo + 1 - ph.shape[3])))
        ph = ph.reshape(N, C, Lph)
        return jnp.pad(ph, ((0, 0), (0, 0), (0, Lph_pad - Lph)))

    p00, p01, p10, p11 = _phase(0, 0), _phase(0, 1), _phase(1, 0), _phase(1, 1)

    # Tap-major weights: w_all[kh*3+kw, o, c] = conv_weight[o, c, kh, kw].
    w_all = jnp.transpose(conv_weight, (2, 3, 0, 1)).reshape(9, C, C)
    w_all = w_all.astype(compute_dtype)

    # Valid-pixel mask over the over-wide flat layout.
    k = jnp.arange(Lw_pad, dtype=jnp.int32)
    valid = ((k % Wo1 < Wo) & (k < Lw)).astype(jnp.float32).reshape(1, Lw_pad)

    kernel = _make_conv_stats_kernel(C, Ho, Wo, Lw_pad)
    phase_spec = pl.BlockSpec((1, C, Lph_pad), lambda n: (n, 0, 0))
    y_wide, stats = pl.pallas_call(
        kernel,
        grid=(N,),
        in_specs=[
            pl.BlockSpec((9, C, C), lambda n: (0, 0, 0)),     # weights (resident)
            pl.BlockSpec((1, Lw_pad), lambda n: (0, 0)),      # mask (resident)
            phase_spec, phase_spec, phase_spec, phase_spec,   # 4 phases / image
        ],
        out_specs=(
            pl.BlockSpec((1, C, Lw_pad), lambda n: (n, 0, 0)),
            pl.BlockSpec((1, C, 2), lambda n: (n, 0, 0)),
        ),
        out_shape=(
            jax.ShapeDtypeStruct((N, C, Lw_pad), compute_dtype),
            jax.ShapeDtypeStruct((N, C, 2), jnp.float32),
        ),
        compiler_params=pltpu.CompilerParams(
            dimension_semantics=("parallel",)),
    )(w_all, valid, p00, p01, p10, p11)

    # ---- Tiny reduce: fold train-mode BN into a single scale/shift ----
    count = jnp.float32(N * Ho * Wo)
    ch_sum = jnp.sum(stats[:, :, 0], axis=0)
    ch_sq = jnp.sum(stats[:, :, 1], axis=0)
    mean = ch_sum / count
    # NOTE: E[y^2]-E[y]^2 can lose precision if |mean| >> std; acceptable for
    # these O(1) activations and clamped at zero.
    var = jnp.maximum(ch_sq / count - mean * mean, 0.0)
    scale = gamma.astype(jnp.float32) * lax.rsqrt(var + BN_EPS)
    shift = beta.astype(jnp.float32) - mean * scale

    # ---- Epilogue fused by XLA with the unavoidable junk-column strip ----
    # One read of the bf16 intermediate + one write of the f32 NCHW output; no
    # transpose (the kernel already emits per-image channel-major data).
    y4 = (y_wide[:, :, :Lw]
          .reshape(N, C, Ho, Wo1)[:, :, :, :Wo]
          .astype(jnp.float32))
    z = y4 * scale.reshape(1, C, 1, 1) + shift.reshape(1, C, 1, 1)
    return jnp.where(z > 0, z, LEAKY_SLOPE * z)


def _reference(x, conv_weight, gamma, beta):
    """Pure-JAX f32 reference of the same forward pass (for verification)."""
    xp = jnp.pad(x, ((0, 0), (0, 0), (1, 1), (1, 1)), mode="reflect")
    y = lax.conv_general_dilated(
        xp, conv_weight, window_strides=(2, 2), padding="VALID",
        dimension_numbers=("NCHW", "OIHW", "NCHW"))
    mean = jnp.mean(y, axis=(0, 2, 3), keepdims=True)
    var = jnp.mean((y - mean) ** 2, axis=(0, 2, 3), keepdims=True)
    y_hat = (y - mean) / jnp.sqrt(var + BN_EPS)
    y_bn = y_hat * gamma.reshape(1, -1, 1, 1) + beta.reshape(1, -1, 1, 1)
    return jnp.where(y_bn > 0, y_bn, LEAKY_SLOPE * y_bn)


if __name__ == "__main__":
    key = jax.random.PRNGKey(0)
    k_x, k_w = jax.random.split(key)

    N, C, H, W = 2, 4, 16, 16
    x = jax.random.normal(k_x, (N, C, H, W), dtype=jnp.float32)
    # Conv2d(channel, channel, 3) weight -> (C, C, 3, 3); fresh BN: gamma=1, beta=0.
    conv_weight = 0.1 * jax.random.normal(k_w, (C, C, 3, 3), dtype=jnp.float32)
    gamma = jnp.ones((C,), dtype=jnp.float32)
    beta = jnp.zeros((C,), dtype=jnp.float32)

    fwd = jax.jit(downsample_forward, static_argnames=("compute_dtype",))
    out = jax.block_until_ready(fwd(x, conv_weight, gamma, beta))
    ref = jax.block_until_ready(_reference(x, conv_weight, gamma, beta))

    assert out.shape == (N, C, H // 2, W // 2), out.shape
    # bf16 MXU operands (f32 accumulation / f32 BN stats) vs an all-f32
    # reference: worst-case deviation on these O(1) normalized outputs ~1e-2.
    err = float(jnp.max(jnp.abs(out - ref)))
    assert err < 5e-2, err

    print("KERNEL_OK")
</pallas_src>

<mosaic_0001>
module attributes {stable_mosaic.version = 11 : i64} {
  func.func @kernel(%arg0: i32, %arg1: memref<9x4x4xbf16, #tpu.memory_space<vmem>>, %arg2: memref<1x128xf32, #tpu.memory_space<vmem>>, %arg3: memref<1x4x256xbf16, #tpu.memory_space<vmem>>, %arg4: memref<1x4x256xbf16, #tpu.memory_space<vmem>>, %arg5: memref<1x4x256xbf16, #tpu.memory_space<vmem>>, %arg6: memref<1x4x256xbf16, #tpu.memory_space<vmem>>, %arg7: memref<1x4x128xbf16, #tpu.memory_space<vmem>>, %arg8: memref<1x4x2xf32, #tpu.memory_space<vmem>>) attributes {dimension_semantics = [#tpu.dimension_semantics<parallel>], iteration_bounds = array<i64: 2>, scalar_prefetch = 0 : i64, scratch_operands = 0 : i64, tpu.core_type = #tpu.core_type<tc>, window_params = [{pipeline_mode = #tpu.pipeline_mode<synchronous>, transform_indices = @transform_0, window_bounds = array<i64: 9, 4, 4>}, {pipeline_mode = #tpu.pipeline_mode<synchronous>, transform_indices = @transform_1, window_bounds = array<i64: 1, 128>}, {transform_indices = @transform_2, window_bounds = array<i64: 1, 4, 256>}, {transform_indices = @transform_3, window_bounds = array<i64: 1, 4, 256>}, {transform_indices = @transform_4, window_bounds = array<i64: 1, 4, 256>}, {transform_indices = @transform_5, window_bounds = array<i64: 1, 4, 256>}, {transform_indices = @transform_6, window_bounds = array<i64: 1, 4, 128>}, {transform_indices = @transform_7, window_bounds = array<i64: 1, 4, 2>}]} {
    %cst = arith.constant 0.000000e+00 : f32
    %0 = vector.broadcast %cst : f32 to vector<4x128xf32>
    %c0 = arith.constant 0 : index
    %c0_0 = arith.constant 0 : index
    %c0_1 = arith.constant 0 : index
    %1 = vector.load %arg3[%c0, %c0_0, %c0_1] : memref<1x4x256xbf16, #tpu.memory_space<vmem>>, vector<1x4x128xbf16>
    %2 = vector.shape_cast %1 : vector<1x4x128xbf16> to vector<4x128xbf16>
    %c0_2 = arith.constant 0 : index
    %c0_3 = arith.constant 0 : index
    %c0_4 = arith.constant 0 : index
    %3 = vector.load %arg1[%c0_2, %c0_3, %c0_4] : memref<9x4x4xbf16, #tpu.memory_space<vmem>>, vector<1x4x4xbf16>
    %4 = vector.shape_cast %3 : vector<1x4x4xbf16> to vector<4x4xbf16>
    %cst_5 = arith.constant dense<0.000000e+00> : vector<4x128xf32>
    %5 = tpu.matmul %4, %2, %cst_5 {dimension_numbers = #tpu.dot_dimension_numbers<[1], [0], [0], [1], [0, 0, 1, 1], [], []>} : vector<4x4xbf16>, vector<4x128xbf16>, vector<4x128xf32> -> vector<4x128xf32>
    %6 = arith.addf %0, %5 : vector<4x128xf32>
    %c0_6 = arith.constant 0 : index
    %c0_7 = arith.constant 0 : index
    %c0_8 = arith.constant 0 : index
    %7 = vector.load %arg4[%c0_6, %c0_7, %c0_8] : memref<1x4x256xbf16, #tpu.memory_space<vmem>>, vector<1x4x128xbf16>
    %8 = vector.shape_cast %7 : vector<1x4x128xbf16> to vector<4x128xbf16>
    %c1 = arith.constant 1 : index
    %c0_9 = arith.constant 0 : index
    %c0_10 = arith.constant 0 : index
    %9 = vector.load %arg1[%c1, %c0_9, %c0_10] : memref<9x4x4xbf16, #tpu.memory_space<vmem>>, vector<1x4x4xbf16>
    %10 = vector.shape_cast %9 : vector<1x4x4xbf16> to vector<4x4xbf16>
    %cst_11 = arith.constant dense<0.000000e+00> : vector<4x128xf32>
    %11 = tpu.matmul %10, %8, %cst_11 {dimension_numbers = #tpu.dot_dimension_numbers<[1], [0], [0], [1], [0, 0, 1, 1], [], []>} : vector<4x4xbf16>, vector<4x128xbf16>, vector<4x128xf32> -> vector<4x128xf32>
    %12 = arith.addf %6, %11 : vector<4x128xf32>
    %c0_12 = arith.constant 0 : index
    %c0_13 = arith.constant 0 : index
    %c1_14 = arith.constant 1 : index
    %13 = vector.load %arg3[%c0_12, %c0_13, %c1_14] : memref<1x4x256xbf16, #tpu.memory_space<vmem>>, vector<1x4x128xbf16>
    %14 = vector.shape_cast %13 : vector<1x4x128xbf16> to vector<4x128xbf16>
    %c2 = arith.constant 2 : index
    %c0_15 = arith.constant 0 : index
    %c0_16 = arith.constant 0 : index
    %15 = vector.load %arg1[%c2, %c0_15, %c0_16] : memref<9x4x4xbf16, #tpu.memory_space<vmem>>, vector<1x4x4xbf16>
    %16 = vector.shape_cast %15 : vector<1x4x4xbf16> to vector<4x4xbf16>
    %cst_17 = arith.constant dense<0.000000e+00> : vector<4x128xf32>
    %17 = tpu.matmul %16, %14, %cst_17 {dimension_numbers = #tpu.dot_dimension_numbers<[1], [0], [0], [1], [0, 0, 1, 1], [], []>} : vector<4x4xbf16>, vector<4x128xbf16>, vector<4x128xf32> -> vector<4x128xf32>
    %18 = arith.addf %12, %17 : vector<4x128xf32>
    %c0_18 = arith.constant 0 : index
    %c0_19 = arith.constant 0 : index
    %c0_20 = arith.constant 0 : index
    %19 = vector.load %arg5[%c0_18, %c0_19, %c0_20] : memref<1x4x256xbf16, #tpu.memory_space<vmem>>, vector<1x4x128xbf16>
    %20 = vector.shape_cast %19 : vector<1x4x128xbf16> to vector<4x128xbf16>
    %c3 = arith.constant 3 : index
    %c0_21 = arith.constant 0 : index
    %c0_22 = arith.constant 0 : index
    %21 = vector.load %arg1[%c3, %c0_21, %c0_22] : memref<9x4x4xbf16, #tpu.memory_space<vmem>>, vector<1x4x4xbf16>
    %22 = vector.shape_cast %21 : vector<1x4x4xbf16> to vector<4x4xbf16>
    %cst_23 = arith.constant dense<0.000000e+00> : vector<4x128xf32>
    %23 = tpu.matmul %22, %20, %cst_23 {dimension_numbers = #tpu.dot_dimension_numbers<[1], [0], [0], [1], [0, 0, 1, 1], [], []>} : vector<4x4xbf16>, vector<4x128xbf16>, vector<4x128xf32> -> vector<4x128xf32>
    %24 = arith.addf %18, %23 : vector<4x128xf32>
    %c0_24 = arith.constant 0 : index
    %c0_25 = arith.constant 0 : index
    %c0_26 = arith.constant 0 : index
    %25 = vector.load %arg6[%c0_24, %c0_25, %c0_26] : memref<1x4x256xbf16, #tpu.memory_space<vmem>>, vector<1x4x128xbf16>
    %26 = vector.shape_cast %25 : vector<1x4x128xbf16> to vector<4x128xbf16>
    %c4 = arith.constant 4 : index
    %c0_27 = arith.constant 0 : index
    %c0_28 = arith.constant 0 : index
    %27 = vector.load %arg1[%c4, %c0_27, %c0_28] : memref<9x4x4xbf16, #tpu.memory_space<vmem>>, vector<1x4x4xbf16>
    %28 = vector.shape_cast %27 : vector<1x4x4xbf16> to vector<4x4xbf16>
    %cst_29 = arith.constant dense<0.000000e+00> : vector<4x128xf32>
    %29 = tpu.matmul %28, %26, %cst_29 {dimension_numbers = #tpu.dot_dimension_numbers<[1], [0], [0], [1], [0, 0, 1, 1], [], []>} : vector<4x4xbf16>, vector<4x128xbf16>, vector<4x128xf32> -> vector<4x128xf32>
    %30 = arith.addf %24, %29 : vector<4x128xf32>
    %c0_30 = arith.constant 0 : index
    %c0_31 = arith.constant 0 : index
    %c1_32 = arith.constant 1 : index
    %31 = vector.load %arg5[%c0_30, %c0_31, %c1_32] : memref<1x4x256xbf16, #tpu.memory_space<vmem>>, vector<1x4x128xbf16>
    %32 = vector.shape_cast %31 : vector<1x4x128xbf16> to vector<4x128xbf16>
    %c5 = arith.constant 5 : index
    %c0_33 = arith.constant 0 : index
    %c0_34 = arith.constant 0 : index
    %33 = vector.load %arg1[%c5, %c0_33, %c0_34] : memref<9x4x4xbf16, #tpu.memory_space<vmem>>, vector<1x4x4xbf16>
    %34 = vector.shape_cast %33 : vector<1x4x4xbf16> to vector<4x4xbf16>
    %cst_35 = arith.constant dense<0.000000e+00> : vector<4x128xf32>
    %35 = tpu.matmul %34, %32, %cst_35 {dimension_numbers = #tpu.dot_dimension_numbers<[1], [0], [0], [1], [0, 0, 1, 1], [], []>} : vector<4x4xbf16>, vector<4x128xbf16>, vector<4x128xf32> -> vector<4x128xf32>
    %36 = arith.addf %30, %35 : vector<4x128xf32>
    %c0_36 = arith.constant 0 : index
    %c0_37 = arith.constant 0 : index
    %c9 = arith.constant 9 : index
    %37 = vector.load %arg3[%c0_36, %c0_37, %c9] : memref<1x4x256xbf16, #tpu.memory_space<vmem>>, vector<1x4x128xbf16>
    %38 = vector.shape_cast %37 : vector<1x4x128xbf16> to vector<4x128xbf16>
    %c6 = arith.constant 6 : index
    %c0_38 = arith.constant 0 : index
    %c0_39 = arith.constant 0 : index
    %39 = vector.load %arg1[%c6, %c0_38, %c0_39] : memref<9x4x4xbf16, #tpu.memory_space<vmem>>, vector<1x4x4xbf16>
    %40 = vector.shape_cast %39 : vector<1x4x4xbf16> to vector<4x4xbf16>
    %cst_40 = arith.constant dense<0.000000e+00> : vector<4x128xf32>
    %41 = tpu.matmul %40, %38, %cst_40 {dimension_numbers = #tpu.dot_dimension_numbers<[1], [0], [0], [1], [0, 0, 1, 1], [], []>} : vector<4x4xbf16>, vector<4x128xbf16>, vector<4x128xf32> -> vector<4x128xf32>
    %42 = arith.addf %36, %41 : vector<4x128xf32>
    %c0_41 = arith.constant 0 : index
    %c0_42 = arith.constant 0 : index
    %c9_43 = arith.constant 9 : index
    %43 = vector.load %arg4[%c0_41, %c0_42, %c9_43] : memref<1x4x256xbf16, #tpu.memory_space<vmem>>, vector<1x4x128xbf16>
    %44 = vector.shape_cast %43 : vector<1x4x128xbf16> to vector<4x128xbf16>
    %c7 = arith.constant 7 : index
    %c0_44 = arith.constant 0 : index
    %c0_45 = arith.constant 0 : index
    %45 = vector.load %arg1[%c7, %c0_44, %c0_45] : memref<9x4x4xbf16, #tpu.memory_space<vmem>>, vector<1x4x4xbf16>
    %46 = vector.shape_cast %45 : vector<1x4x4xbf16> to vector<4x4xbf16>
    %cst_46 = arith.constant dense<0.000000e+00> : vector<4x128xf32>
    %47 = tpu.matmul %46, %44, %cst_46 {dimension_numbers = #tpu.dot_dimension_numbers<[1], [0], [0], [1], [0, 0, 1, 1], [], []>} : vector<4x4xbf16>, vector<4x128xbf16>, vector<4x128xf32> -> vector<4x128xf32>
    %48 = arith.addf %42, %47 : vector<4x128xf32>
    %c0_47 = arith.constant 0 : index
    %c0_48 = arith.constant 0 : index
    %c10 = arith.constant 10 : index
    %49 = vector.load %arg3[%c0_47, %c0_48, %c10] : memref<1x4x256xbf16, #tpu.memory_space<vmem>>, vector<1x4x128xbf16>
    %50 = vector.shape_cast %49 : vector<1x4x128xbf16> to vector<4x128xbf16>
    %c8 = arith.constant 8 : index
    %c0_49 = arith.constant 0 : index
    %c0_50 = arith.constant 0 : index
    %51 = vector.load %arg1[%c8, %c0_49, %c0_50] : memref<9x4x4xbf16, #tpu.memory_space<vmem>>, vector<1x4x4xbf16>
    %52 = vector.shape_cast %51 : vector<1x4x4xbf16> to vector<4x4xbf16>
    %cst_51 = arith.constant dense<0.000000e+00> : vector<4x128xf32>
    %53 = tpu.matmul %52, %50, %cst_51 {dimension_numbers = #tpu.dot_dimension_numbers<[1], [0], [0], [1], [0, 0, 1, 1], [], []>} : vector<4x4xbf16>, vector<4x128xbf16>, vector<4x128xf32> -> vector<4x128xf32>
    %54 = arith.addf %48, %53 : vector<4x128xf32>
    %c0_52 = arith.constant 0 : index
    %c0_53 = arith.constant 0 : index
    %55 = vector.load %arg2[%c0_52, %c0_53] : memref<1x128xf32, #tpu.memory_space<vmem>>, vector<1x128xf32>
    %56 = vector.broadcast %55 : vector<1x128xf32> to vector<4x128xf32>
    %57 = arith.mulf %54, %56 : vector<4x128xf32>
    %cst_54 = arith.constant dense<0.000000e+00> : vector<4xf32>
    %58 = vector.multi_reduction <add>, %57, %cst_54 [1] : vector<4x128xf32> to vector<4xf32>
    %59 = vector.shape_cast %58 : vector<4xf32> to vector<4x1xf32>
    %c0_55 = arith.constant 0 : index
    %c0_56 = arith.constant 0 : index
    %c0_57 = arith.constant 0 : index
    %60 = vector.load %arg8[%c0_55, %c0_56, %c0_57] : memref<1x4x2xf32, #tpu.memory_space<vmem>>, vector<1x4x1xf32>
    %61 = vector.shape_cast %60 : vector<1x4x1xf32> to vector<4x1xf32>
    %62 = vector.shape_cast %59 : vector<4x1xf32> to vector<1x4x1xf32>
    tpu.vector_store %arg8[%c0_55, %c0_56, %c0_57], %62 {strides = array<i32>} : memref<1x4x2xf32, #tpu.memory_space<vmem>>, vector<1x4x1xf32>,
    %63 = arith.mulf %57, %54 : vector<4x128xf32>
    %cst_58 = arith.constant dense<0.000000e+00> : vector<4xf32>
    %64 = vector.multi_reduction <add>, %63, %cst_58 [1] : vector<4x128xf32> to vector<4xf32>
    %65 = vector.shape_cast %64 : vector<4xf32> to vector<4x1xf32>
    %c0_59 = arith.constant 0 : index
    %c0_60 = arith.constant 0 : index
    %c1_61 = arith.constant 1 : index
    %66 = vector.load %arg8[%c0_59, %c0_60, %c1_61] : memref<1x4x2xf32, #tpu.memory_space<vmem>>, vector<1x4x1xf32>
    %67 = vector.shape_cast %66 : vector<1x4x1xf32> to vector<4x1xf32>
    %68 = vector.shape_cast %65 : vector<4x1xf32> to vector<1x4x1xf32>
    tpu.vector_store %arg8[%c0_59, %c0_60, %c1_61], %68 {strides = array<i32>} : memref<1x4x2xf32, #tpu.memory_space<vmem>>, vector<1x4x1xf32>,
    %69 = arith.truncf %54 : vector<4x128xf32> to vector<4x128xbf16>
    %c0_62 = arith.constant 0 : index
    %c0_63 = arith.constant 0 : index
    %c0_64 = arith.constant 0 : index
    %70 = vector.load %arg7[%c0_62, %c0_63, %c0_64] : memref<1x4x128xbf16, #tpu.memory_space<vmem>>, vector<1x4x128xbf16>
    %71 = vector.shape_cast %70 : vector<1x4x128xbf16> to vector<4x128xbf16>
    %72 = vector.shape_cast %69 : vector<4x128xbf16> to vector<1x4x128xbf16>
    tpu.vector_store %arg7[%c0_62, %c0_63, %c0_64], %72 {strides = array<i32>} : memref<1x4x128xbf16, #tpu.memory_space<vmem>>, vector<1x4x128xbf16>,
    return
  }
  func.func @transform_0(%arg0: i32) -> (i32, i32, i32) {
    %c0_i32 = arith.constant 0 : i32
    %c0_i32_0 = arith.constant 0 : i32
    %c0_i32_1 = arith.constant 0 : i32
    %c0_i32_2 = arith.constant 0 : i32
    return %c0_i32, %c0_i32_0, %c0_i32_1 : i32, i32, i32
  }
  func.func @transform_1(%arg0: i32) -> (i32, i32) {
    %c0_i32 = arith.constant 0 : i32
    %c0_i32_0 = arith.constant 0 : i32
    %c0_i32_1 = arith.constant 0 : i32
    return %c0_i32, %c0_i32_0 : i32, i32
  }
  func.func @transform_2(%arg0: i32) -> (i32, i32, i32) {
    %c0_i32 = arith.constant 0 : i32
    %c0_i32_0 = arith.constant 0 : i32
    %c0_i32_1 = arith.constant 0 : i32
    return %arg0, %c0_i32, %c0_i32_0 : i32, i32, i32
  }
  func.func @transform_3(%arg0: i32) -> (i32, i32, i32) {
    %c0_i32 = arith.constant 0 : i32
    %c0_i32_0 = arith.constant 0 : i32
    %c0_i32_1 = arith.constant 0 : i32
    return %arg0, %c0_i32, %c0_i32_0 : i32, i32, i32
  }
  func.func @transform_4(%arg0: i32) -> (i32, i32, i32) {
    %c0_i32 = arith.constant 0 : i32
    %c0_i32_0 = arith.constant 0 : i32
    %c0_i32_1 = arith.constant 0 : i32
    return %arg0, %c0_i32, %c0_i32_0 : i32, i32, i32
  }
  func.func @transform_5(%arg0: i32) -> (i32, i32, i32) {
    %c0_i32 = arith.constant 0 : i32
    %c0_i32_0 = arith.constant 0 : i32
    %c0_i32_1 = arith.constant 0 : i32
    return %arg0, %c0_i32, %c0_i32_0 : i32, i32, i32
  }
  func.func @transform_6(%arg0: i32) -> (i32, i32, i32) {
    %c0_i32 = arith.constant 0 : i32
    %c0_i32_0 = arith.constant 0 : i32
    %c0_i32_1 = arith.constant 0 : i32
    return %arg0, %c0_i32, %c0_i32_0 : i32, i32, i32
  }
  func.func @transform_7(%arg0: i32) -> (i32, i32, i32) {
    %c0_i32 = arith.constant 0 : i32
    %c0_i32_0 = arith.constant 0 : i32
    %c0_i32_1 = arith.constant 0 : i32
    return %arg0, %c0_i32, %c0_i32_0 : i32, i32, i32
  }
}

</mosaic_0001>

<llo_original>
// kernel: downsample_forward.1
$region0: #{downsample_forward.1}
  #allocation0 [shape = 'u32[]', space=smem, size = 0x4, offset = 0x4, fixed_abs, tag = 'smem constant byte address 0x4 - core index']
  #allocation1 [shape = 'u32[72,128]{1,0:T(1,128)}', space=vmem, size = 0x9000, scoped, tag = 'internal scratch']
  %s0 = inlined_call_operand.vmem [shape: bf16[9,4,4], index: 0, kind: input, shape index: {}]
  %s1 = inlined_call_operand.vmem [shape: f32[1,128], index: 1, kind: input, shape index: {}]
  %s2 = inlined_call_operand.vmem [shape: bf16[2,4,256], index: 2, kind: input, shape index: {}]
  %s3 = inlined_call_operand.vmem [shape: bf16[2,4,256], index: 3, kind: input, shape index: {}]
  %s4 = inlined_call_operand.vmem [shape: bf16[2,4,256], index: 4, kind: input, shape index: {}]
  %s5 = inlined_call_operand.vmem [shape: bf16[2,4,256], index: 5, kind: input, shape index: {}]
  %s6 = inlined_call_operand.vmem [shape: bf16[2,4,128], index: 6, kind: output, shape index: {0}]
  %s7 = inlined_call_operand.vmem [shape: f32[2,4,2], index: 7, kind: output, shape index: {1}]
  %8 = xla_tuple %s6, %s7
  %s9 = sld [smem:[#allocation0]]
  $region65: #{downsample_forward.1} parent=0
    _
  %s11 = ssub.s32 1, %s9
  %s12 = scalar_select 0, %s11, %s9
  loop: start=0, step=1, limit=4
  $region2: #{downsample_forward.1} parent=0 // loop_pre_header
    _
  $region3: #{downsample_forward.1} parent=0 // loop_header
    %s14 = sphi 0, %s18
    %p15 = scmp.ge.s32.totalorder %s14, 4
    %s22 = sphi 0, %s22
    %s24 = sphi 0, %s22
    %s25 = sphi 0, %s24
    %s39 = sphi 0, %s25
    %s43 = sphi 0, %s43
    %s45 = sphi 0, %s43
    %s46 = sphi 0, %s45
    %s60 = sphi 0, %s46
    %s66 = sphi 0, %s68
    %s69 = sphi 0, %s66
    %s70 = sphi 0, %s69
    %s86 = sphi 0, %s70
    %s92 = sphi 0, %s94
    %s95 = sphi 0, %s92
    %s96 = sphi 0, %s95
    %s112 = sphi 0, %s96
    %s118 = sphi 0, %s120
    %s121 = sphi 0, %s118
    %s122 = sphi 0, %s121
    %s138 = sphi 0, %s122
    %s144 = sphi 0, %s146
    %s147 = sphi 0, %s144
    %s148 = sphi 0, %s147
    %s164 = sphi 0, %s148
    %s170 = sphi 0, %s172
    %s173 = sphi 0, %s170
    %s174 = sphi 0, %s173
    %s190 = sphi 0, %s174
    %s196 = sphi 0, %s198
    %s199 = sphi 0, %s196
    %s200 = sphi 0, %s199
    %s216 = sphi 0, %s200
  $region4: #{downsample_forward.1} parent=0 // loop_header_branch
    %17 = sbr.rel (%p15) target = $region8
  $region5: #{downsample_forward.1} parent=0 // loop_body
    %s19 = ssub.s32 %s14, 1
    %s20 = ssub.s32 %s14, 2
    %s21 = sadd.s32 %s14, 1
    %s23 = sadd.s32 %s22, 1
    %p26 = scmp.eq.s32.totalorder %s14, 1
    %p27 = scmp.ne.s32.totalorder %s22, %s24
    %p28 = scmp.eq.s32.totalorder %s14, 0
    %p29 = por %p27, %p28
    %p30 = scmp.ne.s32.totalorder %s22, %s24
    %p31 = scmp.eq.s32.totalorder %s19, 1
    %p32 = por %p30, %p31
    %p33 = scmp.ne.s32.totalorder %s24, %s25
    %p34 = scmp.eq.s32.totalorder %s19, 0
    %p35 = por %p33, %p34
    %p36 = scmp.ne.s32.totalorder %s24, %s25
    %p37 = scmp.eq.s32.totalorder %s20, 1
    %p38 = por %p36, %p37
    %p40 = scmp.ne.s32.totalorder %s25, %s39
    %p41 = scmp.eq.s32.totalorder %s20, 0
    %p42 = por %p40, %p41
    %s44 = sadd.s32 %s43, 1
    %p47 = scmp.eq.s32.totalorder %s14, 1
    %p48 = scmp.ne.s32.totalorder %s43, %s45
    %p49 = scmp.eq.s32.totalorder %s14, 0
    %p50 = por %p48, %p49
    %p51 = scmp.ne.s32.totalorder %s43, %s45
    %p52 = scmp.eq.s32.totalorder %s19, 1
    %p53 = por %p51, %p52
    %p54 = scmp.ne.s32.totalorder %s45, %s46
    %p55 = scmp.eq.s32.totalorder %s19, 0
    %p56 = por %p54, %p55
    %p57 = scmp.ne.s32.totalorder %s45, %s46
    %p58 = scmp.eq.s32.totalorder %s20, 1
    %p59 = por %p57, %p58
    %p61 = scmp.ne.s32.totalorder %s46, %s60
    %p62 = scmp.eq.s32.totalorder %s20, 0
    %p63 = por %p61, %p62
    %s64 = ssub.s32 %s14, %s21
    %p65 = scmp.eq.s32.totalorder %s64, 0
    %s67 = sadd.s32 %s66, 1
    %s68 = scalar_select %p65, %s66, %s67
    %p71 = pneg %p65
    %p72 = scmp.eq.s32.totalorder %s14, 1
    %p73 = por %p71, %p72
    %p74 = scmp.ne.s32.totalorder %s66, %s69
    %p75 = scmp.eq.s32.totalorder %s14, 0
    %p76 = por %p74, %p75
    %p77 = scmp.ne.s32.totalorder %s66, %s69
    %p78 = scmp.eq.s32.totalorder %s19, 1
    %p79 = por %p77, %p78
    %p80 = scmp.ne.s32.totalorder %s69, %s70
    %p81 = scmp.eq.s32.totalorder %s19, 0
    %p82 = por %p80, %p81
    %p83 = scmp.ne.s32.totalorder %s69, %s70
    %p84 = scmp.eq.s32.totalorder %s20, 1
    %p85 = por %p83, %p84
    %p87 = scmp.ne.s32.totalorder %s70, %s86
    %p88 = scmp.eq.s32.totalorder %s20, 0
    %p89 = por %p87, %p88
    %s90 = ssub.s32 %s14, %s21
    %p91 = scmp.eq.s32.totalorder %s90, 0
    %s93 = sadd.s32 %s92, 1
    %s94 = scalar_select %p91, %s92, %s93
    %p97 = pneg %p91
    %p98 = scmp.eq.s32.totalorder %s14, 1
    %p99 = por %p97, %p98
    %p100 = scmp.ne.s32.totalorder %s92, %s95
    %p101 = scmp.eq.s32.totalorder %s14, 0
    %p102 = por %p100, %p101
    %p103 = scmp.ne.s32.totalorder %s92, %s95
    %p104 = scmp.eq.s32.totalorder %s19, 1
    %p105 = por %p103, %p104
    %p106 = scmp.ne.s32.totalorder %s95, %s96
    %p107 = scmp.eq.s32.totalorder %s19, 0
    %p108 = por %p106, %p107
    %p109 = scmp.ne.s32.totalorder %s95, %s96
    %p110 = scmp.eq.s32.totalorder %s20, 1
    %p111 = por %p109, %p110
    %p113 = scmp.ne.s32.totalorder %s96, %s112
    %p114 = scmp.eq.s32.totalorder %s20, 0
    %p115 = por %p113, %p114
    %s116 = ssub.s32 %s14, %s21
    %p117 = scmp.eq.s32.totalorder %s116, 0
    %s119 = sadd.s32 %s118, 1
    %s120 = scalar_select %p117, %s118, %s119
    %p123 = pneg %p117
    %p124 = scmp.eq.s32.totalorder %s14, 1
    %p125 = por %p123, %p124
    %p126 = scmp.ne.s32.totalorder %s118, %s121
    %p127 = scmp.eq.s32.totalorder %s14, 0
    %p128 = por %p126, %p127
    %p129 = scmp.ne.s32.totalorder %s118, %s121
    %p130 = scmp.eq.s32.totalorder %s19, 1
    %p131 = por %p129, %p130
    %p132 = scmp.ne.s32.totalorder %s121, %s122
    %p133 = scmp.eq.s32.totalorder %s19, 0
    %p134 = por %p132, %p133
    %p135 = scmp.ne.s32.totalorder %s121, %s122
    %p136 = scmp.eq.s32.totalorder %s20, 1
    %p137 = por %p135, %p136
    %p139 = scmp.ne.s32.totalorder %s122, %s138
    %p140 = scmp.eq.s32.totalorder %s20, 0
    %p141 = por %p139, %p140
    %s142 = ssub.s32 %s14, %s21
    %p143 = scmp.eq.s32.totalorder %s142, 0
    %s145 = sadd.s32 %s144, 1
    %s146 = scalar_select %p143, %s144, %s145
    %p149 = pneg %p143
    %p150 = scmp.eq.s32.totalorder %s14, 1
    %p151 = por %p149, %p150
    %p152 = scmp.ne.s32.totalorder %s144, %s147
    %p153 = scmp.eq.s32.totalorder %s14, 0
    %p154 = por %p152, %p153
    %p155 = scmp.ne.s32.totalorder %s144, %s147
    %p156 = scmp.eq.s32.totalorder %s19, 1
    %p157 = por %p155, %p156
    %p158 = scmp.ne.s32.totalorder %s147, %s148
    %p159 = scmp.eq.s32.totalorder %s19, 0
    %p160 = por %p158, %p159
    %p161 = scmp.ne.s32.totalorder %s147, %s148
    %p162 = scmp.eq.s32.totalorder %s20, 1
    %p163 = por %p161, %p162
    %p165 = scmp.ne.s32.totalorder %s148, %s164
    %p166 = scmp.eq.s32.totalorder %s20, 0
    %p167 = por %p165, %p166
    %s168 = ssub.s32 %s14, %s21
    %p169 = scmp.eq.s32.totalorder %s168, 0
    %s171 = sadd.s32 %s170, 1
    %s172 = scalar_select %p169, %s170, %s171
    %p175 = pneg %p169
    %p176 = scmp.eq.s32.totalorder %s14, 1
    %p177 = por %p175, %p176
    %p178 = scmp.ne.s32.totalorder %s170, %s173
    %p179 = scmp.eq.s32.totalorder %s14, 0
    %p180 = por %p178, %p179
    %p181 = scmp.ne.s32.totalorder %s170, %s173
    %p182 = scmp.eq.s32.totalorder %s19, 1
    %p183 = por %p181, %p182
    %p184 = scmp.ne.s32.totalorder %s173, %s174
    %p185 = scmp.eq.s32.totalorder %s19, 0
    %p186 = por %p184, %p185
    %p187 = scmp.ne.s32.totalorder %s173, %s174
    %p188 = scmp.eq.s32.totalorder %s20, 1
    %p189 = por %p187, %p188
    %p191 = scmp.ne.s32.totalorder %s174, %s190
    %p192 = scmp.eq.s32.totalorder %s20, 0
    %p193 = por %p191, %p192
    %s194 = ssub.s32 %s14, %s21
    %p195 = scmp.eq.s32.totalorder %s194, 0
    %s197 = sadd.s32 %s196, 1
    %s198 = scalar_select %p195, %s196, %s197
    %p201 = pneg %p195
    %p202 = scmp.eq.s32.totalorder %s14, 1
    %p203 = por %p201, %p202
    %p204 = scmp.ne.s32.totalorder %s196, %s199
    %p205 = scmp.eq.s32.totalorder %s14, 0
    %p206 = por %p204, %p205
    %p207 = scmp.ne.s32.totalorder %s196, %s199
    %p208 = scmp.eq.s32.totalorder %s19, 1
    %p209 = por %p207, %p208
    %p210 = scmp.ne.s32.totalorder %s199, %s200
    %p211 = scmp.eq.s32.totalorder %s19, 0
    %p212 = por %p210, %p211
    %p213 = scmp.ne.s32.totalorder %s199, %s200
    %p214 = scmp.eq.s32.totalorder %s20, 1
    %p215 = por %p213, %p214
    %p217 = scmp.ne.s32.totalorder %s200, %s216
    %p218 = scmp.eq.s32.totalorder %s20, 0
    %p219 = por %p217, %p218
    %p220 = scmp.le.s32.totalorder 1, %s14
    %p221 = scmp.lt.s32.totalorder %s14, 3
    %p222 = pnand %p220, %p221
    %p223 = pneg %p222
    // Predicated region
    $region9: #{downsample_forward.1} parent=5 // pred_check
      _
    $region10: #{downsample_forward.1} parent=5 // pred_check_branch
      %225 = sbr.rel (%p222) target = $region12
    $region11: #{downsample_forward.1} parent=5 // pred_region
      %s226 = ssub.s32 %s14, 1
      // Predicated region
      $region13: #{downsample_forward.1} parent=11 // pred_check
        %p227 = pneg %p35
      $region14: #{downsample_forward.1} parent=11 // pred_check_branch
        %229 = sbr.rel (%p227) target = $region16
      $region15: #{downsample_forward.1} parent=11 // pred_region
        _
      $region16: #{downsample_forward.1} parent=11 // pred_fallthru
        _
      // Predicated region
      $region17: #{downsample_forward.1} parent=11 // pred_check
        %p230 = pneg %p56
      $region18: #{downsample_forward.1} parent=11 // pred_check_branch
        %232 = sbr.rel (%p230) target = $region20
      $region19: #{downsample_forward.1} parent=11 // pred_region
        _
      $region20: #{downsample_forward.1} parent=11 // pred_fallthru
        _
    $region12: #{downsample_forward.1} parent=5 // pred_fallthru
      _
    %p233 = scmp.lt.s32.totalorder %s14, 2
    // Predicated region
    $region21: #{downsample_forward.1} parent=5 // pred_check
      %p234 = pneg %p233
    $region22: #{downsample_forward.1} parent=5 // pred_check_branch
      %236 = sbr.rel (%p234) target = $region24
    $region23: #{downsample_forward.1} parent=5 // pred_region
      // Predicated region
      $region25: #{downsample_forward.1} parent=23 // pred_check
        %p237 = pneg %p76
      $region26: #{downsample_forward.1} parent=23 // pred_check_branch
        %239 = sbr.rel (%p237) target = $region28
      $region27: #{downsample_forward.1} parent=23 // pred_region
        %p240 = scmp.lt.s32.totalorder %s14, 1
        %s241 = scalar_select %p240, %s14, 1
        %s242 = smul.addr %s241, 2
        %s243 = smul.addr %s242, 2
        %s244 = scalar_lea.vmem %s2, %s243
      $region28: #{downsample_forward.1} parent=23 // pred_fallthru
        _
      // Predicated region
      $region29: #{downsample_forward.1} parent=23 // pred_check
        %p245 = pneg %p102
      $region30: #{downsample_forward.1} parent=23 // pred_check_branch
        %247 = sbr.rel (%p245) target = $region32
      $region31: #{downsample_forward.1} parent=23 // pred_region
        %p248 = scmp.lt.s32.totalorder %s14, 1
        %s249 = scalar_select %p248, %s14, 1
        %s250 = smul.addr %s249, 2
        %s251 = smul.addr %s250, 2
        %s252 = scalar_lea.vmem %s3, %s251
      $region32: #{downsample_forward.1} parent=23 // pred_fallthru
        _
      // Predicated region
      $region33: #{downsample_forward.1} parent=23 // pred_check
        %p253 = pneg %p128
      $region34: #{downsample_forward.1} parent=23 // pred_check_branch
        %255 = sbr.rel (%p253) target = $region36
      $region35: #{downsample_forward.1} parent=23 // pred_region
        %p256 = scmp.lt.s32.totalorder %s14, 1
        %s257 = scalar_select %p256, %s14, 1
        %s258 = smul.addr %s257, 2
        %s259 = smul.addr %s258, 2
        %s260 = scalar_lea.vmem %s4, %s259
      $region36: #{downsample_forward.1} parent=23 // pred_fallthru
        _
      // Predicated region
      $region37: #{downsample_forward.1} parent=23 // pred_check
        %p261 = pneg %p154
      $region38: #{downsample_forward.1} parent=23 // pred_check_branch
        %263 = sbr.rel (%p261) target = $region40
      $region39: #{downsample_forward.1} parent=23 // pred_region
        %p264 = scmp.lt.s32.totalorder %s14, 1
        %s265 = scalar_select %p264, %s14, 1
        %s266 = smul.addr %s265, 2
        %s267 = smul.addr %s266, 2
        %s268 = scalar_lea.vmem %s5, %s267
      $region40: #{downsample_forward.1} parent=23 // pred_fallthru
        _
    $region24: #{downsample_forward.1} parent=5 // pred_fallthru
      _
    %p269 = scmp.le.s32.totalorder 1, %s14
    %p270 = scmp.lt.s32.totalorder %s14, 3
    %p271 = pnand %p269, %p270
    %p272 = pneg %p271
    // Predicated region
    $region41: #{downsample_forward.1} parent=5 // pred_check
      _
    $region42: #{downsample_forward.1} parent=5 // pred_check_branch
      %274 = sbr.rel (%p271) target = $region44
    $region43: #{downsample_forward.1} parent=5 // pred_region
      %s275 = ssub.s32 %s14, 1
      %p276 = pneg %p35
      %p277 = pneg %p32
      %p278 = pneg %p56
      %p279 = pneg %p53
      %p280 = scmp.lt.s32.totalorder %s19, 1
      %s281 = scalar_select %p280, %s19, 1
      %s282 = smul.addr %s281, 2
      %s283 = smul.addr %s282, 2
      %s284 = scalar_lea.vmem %s2, %s283
      %p285 = pneg %p82
      %p286 = pneg %p79
      %p287 = scmp.lt.s32.totalorder %s19, 1
      %s288 = scalar_select %p287, %s19, 1
      %s289 = smul.addr %s288, 2
      %s290 = smul.addr %s289, 2
      %s291 = scalar_lea.vmem %s3, %s290
      %p292 = pneg %p108
      %p293 = pneg %p105
      %p294 = scmp.lt.s32.totalorder %s19, 1
      %s295 = scalar_select %p294, %s19, 1
      %s296 = smul.addr %s295, 2
      %s297 = smul.addr %s296, 2
      %s298 = scalar_lea.vmem %s4, %s297
      %p299 = pneg %p134
      %p300 = pneg %p131
      %p301 = scmp.lt.s32.totalorder %s19, 1
      %s302 = scalar_select %p301, %s19, 1
      %s303 = smul.addr %s302, 2
      %s304 = smul.addr %s303, 2
      %s305 = scalar_lea.vmem %s5, %s304
      %p306 = pneg %p160
      %p307 = pneg %p157
      %p308 = pneg %p186
      %p309 = pneg %p183
      %p310 = scmp.lt.s32.totalorder %s19, 1
      %s311 = scalar_select %p310, %s19, 1
      %s312 = smul.addr %s311, 2
      %s313 = scalar_lea.vmem %s6, %s312
      %p314 = pneg %p212
      %p315 = pneg %p209
      %p316 = scmp.lt.s32.totalorder %s19, 1
      %s317 = scalar_select %p316, %s19, 1
      %s318 = smul.addr %s317, 4
      %s319 = scalar_lea.vmem %s7, %s318
      %p320 = scmp.lt.s32.totalorder %s19, 1
      %s321 = scalar_select %p320, %s19, 1
      %s322 = smul.addr %s321, 2
      %s323 = smul.addr %s322, 2
      %s324 = scalar_lea.vmem %s2, %s323
      %p325 = scmp.lt.s32.totalorder %s19, 1
      %s326 = scalar_select %p325, %s19, 1
      %s327 = smul.addr %s326, 2
      %s328 = smul.addr %s327, 2
      %s329 = scalar_lea.vmem %s3, %s328
      %p330 = scmp.lt.s32.totalorder %s19, 1
      %s331 = scalar_select %p330, %s19, 1
      %s332 = smul.addr %s331, 2
      %s333 = smul.addr %s332, 2
      %s334 = scalar_lea.vmem %s4, %s333
      %p335 = scmp.lt.s32.totalorder %s19, 1
      %s336 = scalar_select %p335, %s19, 1
      %s337 = smul.addr %s336, 2
      %s338 = smul.addr %s337, 2
      %s339 = scalar_lea.vmem %s5, %s338
      %p340 = scmp.lt.s32.totalorder %s19, 1
      %s341 = scalar_select %p340, %s19, 1
      %s342 = smul.addr %s341, 2
      %s343 = scalar_lea.vmem %s6, %s342
      %p344 = scmp.lt.s32.totalorder %s19, 1
      %s345 = scalar_select %p344, %s19, 1
      %s346 = smul.addr %s345, 4
      %s347 = scalar_lea.vmem %s7, %s346
      %v349 = vld [vmem:[%s324] sm:$0x3]
      %v350 = vld [vmem:[%s0] sm:$0x3]
      %v351 = vld [vmem:[%s329] sm:$0x3]
      %s352 = scalar_lea.vmem %s0, 2
      %v353 = vld [vmem:[%s352] sm:$0x3]
      %vm354 = vcmask 31744
      %v356 = vsel %vm354, %v353, 0
      %vm358 = vcmask 1041408
      %v360 = vsel %vm358, %v351, 0
      %362 = vmatpush.bf16.msra.mxu0 0
      %363 = vmatpush.bf16.msra.mxu0 0
      %364 = vmatpush.bf16.msra.mxu0 0
      %365 = vmatpush.bf16.msra.mxu0 0
      %366 = vmatpush.bf16.msra.mxu0 0
      %367 = vmatpush.bf16.msra.mxu0 0
      %368 = vmatpush.bf16.msra.mxu0 0
      %369 = vmatpush.bf16.msra.mxu0 %v360
      %370 = vmatmul.bf16.gmra.mxu0 %v356
      %v371 = vpop.f32.mrf.mxu0
      %v372 = vadd.f32 0.0, %v371
      %v373 = vpop.f32.mrf.mxu0
      %374 = vdwg.mxu0
      %v376 = vsel %vm354, %v350, 0
      %v379 = vsel %vm358, %v349, 0
      %381 = vmatpush.bf16.msra.mxu0 0
      %382 = vmatpush.bf16.msra.mxu0 0
      %383 = vmatpush.bf16.msra.mxu0 0
      %384 = vmatpush.bf16.msra.mxu0 0
      %385 = vmatpush.bf16.msra.mxu0 0
      %386 = vmatpush.bf16.msra.mxu0 0
      %387 = vmatpush.bf16.msra.mxu0 0
      %388 = vmatpush.bf16.msra.mxu0 %v379
      %389 = vmatmul.bf16.gmra.mxu0 %v376
      %v390 = vpop.f32.mrf.mxu0
      %v391 = vadd.f32 %v372, %v390
      %v392 = vpop.f32.mrf.mxu0
      %393 = vdwg.mxu0
      %v394 = vld [vmem:[%s324] sm:$0xf]
      %s395 = scalar_lea.vmem %s0, 4
      %v396 = vld [vmem:[%s395] sm:$0x3]
      %398 = vst [vmem:[#allocation1] ss:$4 sm:$0xff] %v394
      %v399 = vld.sshfl [vmem:[#allocation1] sm:$0xff pattern:$0x73625140]
      %v401 = vld.sshfl [vmem:[#allocation1 + $0x8] sm:$0xff pattern:$0x73625140]
      %403 = vrot.lane.b32.xlu0 %v399, 127
      %v404 = vpop.permute.xlu0 %403
      %405 = vrot.lane.b32.xlu0 %v401, 127
      %v406 = vpop.permute.xlu0 %405
      %vm407 = vcmask 1039360
      %v408 = vsel %vm407, %v404, %v406
      %v410 = vsel %vm354, %v396, 0
      %v413 = vsel %vm358, %v408, 0
      %415 = vmatpush.bf16.msra.mxu0 0
      %416 = vmatpush.bf16.msra.mxu0 0
      %417 = vmatpush.bf16.msra.mxu0 0
      %418 = vmatpush.bf16.msra.mxu0 0
      %419 = vmatpush.bf16.msra.mxu0 0
      %420 = vmatpush.bf16.msra.mxu0 0
      %421 = vmatpush.bf16.msra.mxu0 0
      %422 = vmatpush.bf16.msra.mxu0 %v413
      %423 = vmatmul.bf16.gmra.mxu0 %v410
      %v424 = vpop.f32.mrf.mxu0
      %v425 = vadd.f32 0.0, %v424
      %v426 = vpop.f32.mrf.mxu0
      %427 = vdwg.mxu0
      %v428 = vadd.f32 %v391, %v425
      %v429 = vld [vmem:[%s334] sm:$0x3]
      %s430 = scalar_lea.vmem %s0, 6
      %v431 = vld [vmem:[%s430] sm:$0x3]
      %v433 = vsel %vm354, %v431, 0
      %v436 = vsel %vm358, %v429, 0
      %438 = vmatpush.bf16.msra.mxu0 0
      %439 = vmatpush.bf16.msra.mxu0 0
      %440 = vmatpush.bf16.msra.mxu0 0
      %441 = vmatpush.bf16.msra.mxu0 0
      %442 = vmatpush.bf16.msra.mxu0 0
      %443 = vmatpush.bf16.msra.mxu0 0
      %444 = vmatpush.bf16.msra.mxu0 0
      %445 = vmatpush.bf16.msra.mxu0 %v436
      %446 = vmatmul.bf16.gmra.mxu0 %v433
      %v447 = vpop.f32.mrf.mxu0
      %v448 = vadd.f32 0.0, %v447
      %v449 = vpop.f32.mrf.mxu0
      %450 = vdwg.mxu0
      %v451 = vadd.f32 %v428, %v448
      %v452 = vld [vmem:[%s339] sm:$0x3]
      %s453 = scalar_lea.vmem %s0, 8
      %v454 = vld [vmem:[%s453] sm:$0x3]
      %v456 = vsel %vm354, %v454, 0
      %v459 = vsel %vm358, %v452, 0
      %461 = vmatpush.bf16.msra.mxu0 0
      %462 = vmatpush.bf16.msra.mxu0 0
      %463 = vmatpush.bf16.msra.mxu0 0
      %464 = vmatpush.bf16.msra.mxu0 0
      %465 = vmatpush.bf16.msra.mxu0 0
      %466 = vmatpush.bf16.msra.mxu0 0
      %467 = vmatpush.bf16.msra.mxu0 0
      %468 = vmatpush.bf16.msra.mxu0 %v459
      %469 = vmatmul.bf16.gmra.mxu0 %v456
      %v470 = vpop.f32.mrf.mxu0
      %v471 = vadd.f32 0.0, %v470
      %v472 = vpop.f32.mrf.mxu0
      %473 = vdwg.mxu0
      %v474 = vadd.f32 %v451, %v471
      %v475 = vld [vmem:[%s334] sm:$0xf]
      %s476 = scalar_lea.vmem %s0, 10
      %v477 = vld [vmem:[%s476] sm:$0x3]
      %479 = vst [vmem:[#allocation1] ss:$4 sm:$0xff] %v475
      %v480 = vld.sshfl [vmem:[#allocation1] sm:$0xff pattern:$0x73625140]
      %v482 = vld.sshfl [vmem:[#allocation1 + $0x8] sm:$0xff pattern:$0x73625140]
      %484 = vrot.lane.b32.xlu0 %v480, 127
      %v485 = vpop.permute.xlu0 %484
      %486 = vrot.lane.b32.xlu0 %v482, 127
      %v487 = vpop.permute.xlu0 %486
      %v488 = vsel %vm407, %v485, %v487
      %v490 = vsel %vm354, %v477, 0
      %v493 = vsel %vm358, %v488, 0
      %495 = vmatpush.bf16.msra.mxu0 0
      %496 = vmatpush.bf16.msra.mxu0 0
      %497 = vmatpush.bf16.msra.mxu0 0
      %498 = vmatpush.bf16.msra.mxu0 0
      %499 = vmatpush.bf16.msra.mxu0 0
      %500 = vmatpush.bf16.msra.mxu0 0
      %501 = vmatpush.bf16.msra.mxu0 0
      %502 = vmatpush.bf16.msra.mxu0 %v493
      %503 = vmatmul.bf16.gmra.mxu0 %v490
      %v504 = vpop.f32.mrf.mxu0
      %v505 = vadd.f32 0.0, %v504
      %v506 = vpop.f32.mrf.mxu0
      %507 = vdwg.mxu0
      %v508 = vadd.f32 %v474, %v505
      %v509 = vld [vmem:[%s324] sm:$0xf]
      %s510 = scalar_lea.vmem %s0, 12
      %v511 = vld [vmem:[%s510] sm:$0x3]
      %513 = vst [vmem:[#allocation1] ss:$4 sm:$0xff] %v509
      %v514 = vld.sshfl [vmem:[#allocation1] sm:$0xff pattern:$0x73625140]
      %v516 = vld.sshfl [vmem:[#allocation1 + $0x8] sm:$0xff pattern:$0x73625140]
      %518 = vrot.lane.b32.xlu0 %v514, 119
      %v519 = vpop.permute.xlu0 %518
      %520 = vrot.lane.b32.xlu0 %v516, 119
      %v521 = vpop.permute.xlu0 %520
      %vm522 = vcmask 973824
      %v523 = vsel %vm522, %v519, %v521
      %v525 = vsel %vm354, %v511, 0
      %v528 = vsel %vm358, %v523, 0
      %530 = vmatpush.bf16.msra.mxu0 0
      %531 = vmatpush.bf16.msra.mxu0 0
      %532 = vmatpush.bf16.msra.mxu0 0
      %533 = vmatpush.bf16.msra.mxu0 0
      %534 = vmatpush.bf16.msra.mxu0 0
      %535 = vmatpush.bf16.msra.mxu0 0
      %536 = vmatpush.bf16.msra.mxu0 0
      %537 = vmatpush.bf16.msra.mxu0 %v528
      %538 = vmatmul.bf16.gmra.mxu0 %v525
      %v539 = vpop.f32.mrf.mxu0
      %v540 = vadd.f32 0.0, %v539
      %v541 = vpop.f32.mrf.mxu0
      %542 = vdwg.mxu0
      %v543 = vadd.f32 %v508, %v540
      %v544 = vld [vmem:[%s329] sm:$0xf]
      %s545 = scalar_lea.vmem %s0, 14
      %v546 = vld [vmem:[%s545] sm:$0x3]
      %548 = vst [vmem:[#allocation1] ss:$4 sm:$0xff] %v544
      %v549 = vld.sshfl [vmem:[#allocation1] sm:$0xff pattern:$0x73625140]
      %v551 = vld.sshfl [vmem:[#allocation1 + $0x8] sm:$0xff pattern:$0x73625140]
      %553 = vrot.lane.b32.xlu0 %v549, 119
      %v554 = vpop.permute.xlu0 %553
      %555 = vrot.lane.b32.xlu0 %v551, 119
      %v556 = vpop.permute.xlu0 %555
      %v557 = vsel %vm522, %v554, %v556
      %v559 = vsel %vm354, %v546, 0
      %v562 = vsel %vm358, %v557, 0
      %564 = vmatpush.bf16.msra.mxu0 0
      %565 = vmatpush.bf16.msra.mxu0 0
      %566 = vmatpush.bf16.msra.mxu0 0
      %567 = vmatpush.bf16.msra.mxu0 0
      %568 = vmatpush.bf16.msra.mxu0 0
      %569 = vmatpush.bf16.msra.mxu0 0
      %570 = vmatpush.bf16.msra.mxu0 0
      %571 = vmatpush.bf16.msra.mxu0 %v562
      %572 = vmatmul.bf16.gmra.mxu0 %v559
      %v573 = vpop.f32.mrf.mxu0
      %v574 = vadd.f32 0.0, %v573
      %v575 = vpop.f32.mrf.mxu0
      %576 = vdwg.mxu0
      %v577 = vadd.f32 %v543, %v574
      %v578 = vld [vmem:[%s324] sm:$0xf]
      %s579 = scalar_lea.vmem %s0, 16
      %v580 = vld [vmem:[%s579] sm:$0x3]
      %582 = vst [vmem:[#allocation1] ss:$4 sm:$0xff] %v578
      %v583 = vld.sshfl [vmem:[#allocation1] sm:$0xff pattern:$0x73625140]
      %v585 = vld.sshfl [vmem:[#allocation1 + $0x8] sm:$0xff pattern:$0x73625140]
      %587 = vrot.lane.b32.xlu0 %v583, 118
      %v588 = vpop.permute.xlu0 %587
      %589 = vrot.lane.b32.xlu0 %v585, 118
      %v590 = vpop.permute.xlu0 %589
      %vm591 = vcmask 965632
      %v592 = vsel %vm591, %v588, %v590
      %v594 = vsel %vm354, %v580, 0
      %v597 = vsel %vm358, %v592, 0
      %599 = vmatpush.bf16.msra.mxu0 0
      %600 = vmatpush.bf16.msra.mxu0 0
      %601 = vmatpush.bf16.msra.mxu0 0
      %602 = vmatpush.bf16.msra.mxu0 0
      %603 = vmatpush.bf16.msra.mxu0 0
      %604 = vmatpush.bf16.msra.mxu0 0
      %605 = vmatpush.bf16.msra.mxu0 0
      %606 = vmatpush.bf16.msra.mxu0 %v597
      %607 = vmatmul.bf16.gmra.mxu0 %v594
      %v608 = vpop.f32.mrf.mxu0
      %v609 = vadd.f32 0.0, %v608
      %v610 = vpop.f32.mrf.mxu0
      %611 = vdwg.mxu0
      %v612 = vadd.f32 %v577, %v609
      %v613 = vld [vmem:[%s1] sm:$0x1]
      %v615 = vperm.slane %v613, 0
      %v617 = vmul.f32 %v612, %v615
      %vm618 = vcmask 1043456
      %v619 = vsel %vm618, %v617, 0.0
      %620 = vadd.xlane.f32.xlu0 %v619
      %v621 = vpop.xlane.xlu0 %620
      %vm622 = vcmask 3072
      %623 = vst.msk [vmem:[%s347] sm:$0xf] %vm622, %v621
      %v624 = vmul.f32 %v617, %v612
      %v625 = vsel %vm618, %v624, 0.0
      %626 = vadd.xlane.f32.xlu0 %v625
      %v627 = vpop.xlane.xlu0 %626
      %vm628 = vcmask 11272
      %629 = vst.msk [vmem:[%s347] sm:$0xf] %vm628, %v627
      %v630 = vpack.c.bf16 %v612, %v612
      %631 = vst [vmem:[%s343] sm:$0x3] %v630
      %p632 = scmp.lt.s32.totalorder %s19, 1
      %s633 = scalar_select %p632, %s19, 1
      %s634 = smul.addr %s633, 2
      %s635 = scalar_lea.vmem %s6, %s634
      %p636 = scmp.lt.s32.totalorder %s19, 1
      %s637 = scalar_select %p636, %s19, 1
      %s638 = smul.addr %s637, 4
      %s639 = scalar_lea.vmem %s7, %s638
      // Predicated region
      $region45: #{downsample_forward.1} parent=43 // pred_check
        %p640 = pneg %p183
      $region46: #{downsample_forward.1} parent=43 // pred_check_branch
        %642 = sbr.rel (%p640) target = $region48
      $region47: #{downsample_forward.1} parent=43 // pred_region
        _
      $region48: #{downsample_forward.1} parent=43 // pred_fallthru
        _
      // Predicated region
      $region49: #{downsample_forward.1} parent=43 // pred_check
        %p643 = pneg %p209
      $region50: #{downsample_forward.1} parent=43 // pred_check_branch
        %645 = sbr.rel (%p643) target = $region52
      $region51: #{downsample_forward.1} parent=43 // pred_region
        _
      $region52: #{downsample_forward.1} parent=43 // pred_fallthru
        _
    $region44: #{downsample_forward.1} parent=5 // pred_fallthru
      _
    %p646 = scmp.le.s32.totalorder 2, %s14
    // Predicated region
    $region53: #{downsample_forward.1} parent=5 // pred_check
      %p647 = pneg %p646
    $region54: #{downsample_forward.1} parent=5 // pred_check_branch
      %649 = sbr.rel (%p647) target = $region56
    $region55: #{downsample_forward.1} parent=5 // pred_region
      %s650 = ssub.s32 %s14, 2
      // Predicated region
      $region57: #{downsample_forward.1} parent=55 // pred_check
        %p651 = pneg %p189
      $region58: #{downsample_forward.1} parent=55 // pred_check_branch
        %653 = sbr.rel (%p651) target = $region60
      $region59: #{downsample_forward.1} parent=55 // pred_region
        %p654 = scmp.lt.s32.totalorder %s20, 1
        %s655 = scalar_select %p654, %s20, 1
        %s656 = smul.addr %s655, 2
        %s657 = scalar_lea.vmem %s6, %s656
      $region60: #{downsample_forward.1} parent=55 // pred_fallthru
        _
      // Predicated region
      $region61: #{downsample_forward.1} parent=55 // pred_check
        %p658 = pneg %p215
      $region62: #{downsample_forward.1} parent=55 // pred_check_branch
        %660 = sbr.rel (%p658) target = $region64
      $region63: #{downsample_forward.1} parent=55 // pred_region
        %p661 = scmp.lt.s32.totalorder %s20, 1
        %s662 = scalar_select %p661, %s20, 1
        %s663 = smul.addr %s662, 4
        %s664 = scalar_lea.vmem %s7, %s663
      $region64: #{downsample_forward.1} parent=55 // pred_fallthru
        _
    $region56: #{downsample_forward.1} parent=5 // pred_fallthru
      _
  $region6: #{downsample_forward.1} parent=0 // loop_footer
    %s18 = sadd.s32 1, %s14
  $region7: #{downsample_forward.1} parent=0 // loop_footer_branch
    %13 = sbr.rel target = $region3
  $region8: #{downsample_forward.1} parent=0 // loop_exit
    _

</llo_original>
